<compile_context>
chip_gen: v7x
topology: tpu7x:2x2x1
jax: 0.10.0
libtpu: 0.0.40
codegen_flags: <defaults>
</compile_context>

<pallas_src>
import functools

import jax
import jax.numpy as jnp
from jax import lax
from jax.experimental import pallas as pl
from jax.experimental.pallas import tpu as pltpu


# --------------------------------------------------------------------------
# Tunables (sized to be safe on v5e / v6e / v7x; v7x has only 64 MiB VMEM/TC)
# --------------------------------------------------------------------------

_MAX_TILE_BYTES = 4 * 1024 * 1024        # rescale row tiles (~85%+ of HBM roofline)
_RESCALE_VMEM_LIMIT = 40 << 20           # covers 2x(in) + 2x(out) tile buffers
_RESCALE_FUSED_MAX_BYTES = 16 << 20      # fused path: z + out resident (2x z <= 32 MiB)
_GATHER_VMEM_MAX_BYTES = 28 << 20        # whole z resident (single buffer) in VMEM
_GATHER_MAX_ROWS_PER_STEP = 64           # unrolled rows / grid step (VMEM path)
_GATHER_DMA_ROWS_PER_STEP = 16           # row DMAs in flight / grid step (HBM path)


# --------------------------------------------------------------------------
# Tiling helpers
# --------------------------------------------------------------------------

def _row_tile(n_rows, n_cols, itemsize):
    """Largest row tile that keeps blocks ~4 MiB, rounded to the native sublane
    packing of the dtype (8 for 4-byte, 16 for 2-byte, 32 for 1-byte)."""
    sub = max(8, 32 // max(1, itemsize))
    rows = _MAX_TILE_BYTES // max(1, n_cols * itemsize)
    rows = max(sub, (int(rows) // sub) * sub)
    if rows >= n_rows:
        return n_rows            # full extent is always legal
    return rows


def _lane_dense_shape(n_rows, n_cols):
    """Reshape target making the last dim a multiple of 128 (lane-dense stores),
    when the element count allows it. rescale is a global reduction + elementwise,
    so any total-preserving reshape is semantically free."""
    if n_cols % 128 == 0:
        return n_rows, n_cols
    total = n_rows * n_cols
    for cols in (2048, 1024, 512, 256, 128):
        if total % cols == 0:
            return total // cols, cols
    return n_rows, n_cols        # fall back to masked partial stores


def _gather_rows_per_step(n_out, row_bytes, cap):
    """Rows per grid step: target ~0.5 MiB output tiles (amortizes the ~0.35 us
    per-step overhead) while keeping the static unroll bounded by `cap`."""
    target = max(8, (512 * 1024) // max(1, row_bytes))
    r = min(n_out, cap, target)
    if r < n_out:                # must be a multiple of 8 unless full extent
        r = max(8, (r // 8) * 8)
    return r


# --------------------------------------------------------------------------
# Gather kernels (forward(ixs))
# --------------------------------------------------------------------------

def _gather_vmem_kernel(ixs_ref, z_ref, o_ref, *, n_out, n_samples,
                        rows_per_step):
    # ixs_ref : SMEM (n_out,) int32   (scalar-prefetched indices)
    # z_ref   : VMEM (n_samples, dim) whole table, single-buffered (un-blocked spec)
    # o_ref   : VMEM (rows_per_step, dim) output tile
    base = pl.program_id(0) * rows_per_step
    rows = []
    for j in range(rows_per_step):           # static unroll
        # Clamp the position so padded rows of a partial last block never read
        # ixs out of range, and clamp the index itself so a bad user index can
        # never read out-of-bounds VMEM (PyTorch would raise; we clamp).
        pos = jnp.minimum(base + j, n_out - 1)
        src = jnp.clip(ixs_ref[pos], 0, n_samples - 1)
        rows.append(z_ref[pl.ds(src, 1), :])
    # One coalesced full-tile store instead of rows_per_step masked row stores.
    o_ref[...] = jnp.concatenate(rows, axis=0)


def _gather_dma_kernel(ixs_ref, z_hbm, o_ref, sems, *, n_out, n_samples,
                       rows_per_step):
    # Fallback for z too large for VMEM: z stays in HBM, rows are DMA'd directly
    # into the (VMEM) output tile, rows_per_step copies in flight per step.
    base = pl.program_id(0) * rows_per_step
    copies = []
    for j in range(rows_per_step):            # static unroll: issue all DMAs
        pos = jnp.minimum(base + j, n_out - 1)
        src = jnp.clip(ixs_ref[pos], 0, n_samples - 1)
        cp = pltpu.make_async_copy(z_hbm.at[pl.ds(src, 1), :],
                                   o_ref.at[pl.ds(j, 1), :],
                                   sems.at[j])
        cp.start()
        copies.append(cp)
    for cp in copies:                          # then wait for all of them
        cp.wait()


# --------------------------------------------------------------------------
# Rescale kernels
# --------------------------------------------------------------------------

def _rescale_fused_kernel(z_ref, o_ref, *, n_total):
    # Single pass over a VMEM-resident z: two-pass (mean, then centered sumsq)
    # variance -> numerically safe; one HBM read + one HBM write total.
    zf = z_ref[...].astype(jnp.float32)
    m = jnp.sum(zf) / n_total
    centered = zf - m
    var = jnp.sum(centered * centered) / max(n_total - 1, 1)   # ddof=1
    inv_sd = lax.rsqrt(jnp.maximum(var, 1e-30))                # guard var<=0
    o_ref[...] = (centered * inv_sd).astype(o_ref.dtype)


def _stats_kernel(z_ref, stats_ref, *, n_rows, n_total, need_mask):
    # Phase 1 of tiled rescale: accumulate sum / sum-of-squares over row tiles
    # into SMEM, convert to [mean, 1/std] on the last grid step.
    i = pl.program_id(0)
    z = z_ref[...].astype(jnp.float32)
    if need_mask:  # static: only emitted when the last row tile is partial
        row = lax.broadcasted_iota(jnp.int32, z.shape, 0) + i * z_ref.shape[0]
        z = jnp.where(row < n_rows, z, 0.0)

    @pl.when(i == 0)
    def _():
        stats_ref[0] = 0.0
        stats_ref[1] = 0.0

    stats_ref[0] += jnp.sum(z)
    stats_ref[1] += jnp.sum(z * z)

    @pl.when(i == pl.num_programs(0) - 1)
    def _():
        s = stats_ref[0]
        sq = stats_ref[1]
        m = s / n_total
        # One-pass unbiased variance, guarded against cancellation going <= 0.
        # TODO(synk): switch the tiled path to a two-pass / Welford scheme for
        # data with |mean| >> std or n_samples*dim in the hundreds of millions.
        var = (sq - n_total * m * m) / max(n_total - 1, 1)
        var = jnp.maximum(var, 1e-30)
        stats_ref[0] = m
        stats_ref[1] = lax.rsqrt(var)   # per-element op becomes a multiply


def _apply_kernel(stats_ref, z_ref, o_ref):
    # Phase 2 of tiled rescale: elementwise (z - mean) * inv_std over row tiles.
    m = stats_ref[0]
    inv_sd = stats_ref[1]
    o_ref[...] = ((z_ref[...].astype(jnp.float32) - m) * inv_sd).astype(o_ref.dtype)


# --------------------------------------------------------------------------
# Wrappers
# --------------------------------------------------------------------------

def representation_forward(z, ixs=None, *, force_dma=False):
    """Pallas implementation of RepresentationLayer.forward."""
    n_samples, dim = z.shape

    if ixs is None:
        # PyTorch forward returns self.z (no copy); do the same -- free.
        return z

    ixs = jnp.asarray(ixs, dtype=jnp.int32).reshape(-1)
    n_out = int(ixs.shape[0])
    if n_out == 0:
        return jnp.zeros((0, dim), z.dtype)

    itemsize = jnp.dtype(z.dtype).itemsize
    row_bytes = dim * itemsize
    z_bytes = n_samples * row_bytes
    use_dma = force_dma or z_bytes > _GATHER_VMEM_MAX_BYTES

    if not use_dma:
        # --- z resident in VMEM (single buffer; un-blocked spec => no double buffer).
        r = _gather_rows_per_step(n_out, row_bytes, _GATHER_MAX_ROWS_PER_STEP)
        kernel = functools.partial(_gather_vmem_kernel, n_out=n_out,
                                   n_samples=n_samples, rows_per_step=r)
        vmem_limit = int(min(max(z_bytes + 4 * r * row_bytes + (2 << 20),
                                 16 << 20), 56 << 20))
        return pl.pallas_call(
            kernel,
            out_shape=jax.ShapeDtypeStruct((n_out, dim), z.dtype),
            grid_spec=pltpu.PrefetchScalarGridSpec(
                num_scalar_prefetch=1,
                grid=(pl.cdiv(n_out, r),),
                in_specs=[pl.BlockSpec(memory_space=pltpu.MemorySpace.VMEM)],
                out_specs=pl.BlockSpec((r, dim), lambda i, ixs_ref: (i, 0)),
            ),
            compiler_params=pltpu.CompilerParams(
                dimension_semantics=("parallel",),
                vmem_limit_bytes=vmem_limit),
        )(ixs, z)

    # --- z too large for VMEM: keep it in HBM and gather rows with manual DMAs.
    r = _gather_rows_per_step(n_out, row_bytes, _GATHER_DMA_ROWS_PER_STEP)
    kernel = functools.partial(_gather_dma_kernel, n_out=n_out,
                               n_samples=n_samples, rows_per_step=r)
    return pl.pallas_call(
        kernel,
        out_shape=jax.ShapeDtypeStruct((n_out, dim), z.dtype),
        grid_spec=pltpu.PrefetchScalarGridSpec(
            num_scalar_prefetch=1,
            grid=(pl.cdiv(n_out, r),),
            in_specs=[pl.BlockSpec(memory_space=pl.ANY)],
            out_specs=pl.BlockSpec((r, dim), lambda i, ixs_ref: (i, 0)),
            scratch_shapes=[pltpu.SemaphoreType.DMA((r,))],
        ),
        compiler_params=pltpu.CompilerParams(
            dimension_semantics=("arbitrary",)),
    )(ixs, z)


def representation_rescale(z, *, force_tiled=False):
    """Pallas implementation of RepresentationLayer.rescale (returns new z).

    # TODO(synk): PyTorch rescales in place; an input_output_aliases={1: 0}
    # variant of the apply call would match that under jit donation.
    # TODO(synk): on v7x, split phase 1 across the two TensorCores with a
    # core-parallel leading grid axis and per-core partial [sum, sumsq].
    """
    n_samples, dim = z.shape
    itemsize = jnp.dtype(z.dtype).itemsize
    total = n_samples * dim
    z_bytes = total * itemsize

    # Lane-dense view (cols multiple of 128) when possible: unmasked full-tile
    # stores are the single biggest lever for these memory-bound kernels.
    vrows, vcols = _lane_dense_shape(n_samples, dim)
    zv = z.reshape(vrows, vcols) if (vrows, vcols) != (n_samples, dim) else z

    if (not force_tiled) and z_bytes <= _RESCALE_FUSED_MAX_BYTES:
        # Fast path: one un-gridded kernel, z + out resident in VMEM (2x z HBM
        # traffic instead of 3x, and numerically safe two-pass variance).
        out = pl.pallas_call(
            functools.partial(_rescale_fused_kernel, n_total=total),
            out_shape=jax.ShapeDtypeStruct((vrows, vcols), z.dtype),
            compiler_params=pltpu.CompilerParams(
                vmem_limit_bytes=_RESCALE_VMEM_LIMIT),
        )(zv)
        return out.reshape(n_samples, dim)

    # Tiled two-phase path for large z.
    tr = _row_tile(vrows, vcols, itemsize)
    grid = (pl.cdiv(vrows, tr),)
    need_mask = (vrows % tr) != 0

    # Phase 1: global reduction over row tiles -> [mean, 1/std] in SMEM.
    stats = pl.pallas_call(
        functools.partial(_stats_kernel, n_rows=vrows, n_total=total,
                          need_mask=need_mask),
        out_shape=jax.ShapeDtypeStruct((2,), jnp.float32),
        grid=grid,
        in_specs=[pl.BlockSpec((tr, vcols), lambda i: (i, 0))],
        out_specs=pl.BlockSpec(memory_space=pltpu.MemorySpace.SMEM),
        compiler_params=pltpu.CompilerParams(
            dimension_semantics=("arbitrary",),       # sequential accumulation
            vmem_limit_bytes=_RESCALE_VMEM_LIMIT),
    )(zv)

    # Phase 2: tiled elementwise apply (independent tiles -> "parallel").
    out = pl.pallas_call(
        _apply_kernel,
        out_shape=jax.ShapeDtypeStruct((vrows, vcols), z.dtype),
        grid=grid,
        in_specs=[pl.BlockSpec(memory_space=pltpu.MemorySpace.SMEM),
                  pl.BlockSpec((tr, vcols), lambda i: (i, 0))],
        out_specs=pl.BlockSpec((tr, vcols), lambda i: (i, 0)),
        compiler_params=pltpu.CompilerParams(
            dimension_semantics=("parallel",),
            vmem_limit_bytes=_RESCALE_VMEM_LIMIT),
    )(stats, zv)
    return out.reshape(n_samples, dim)


def init_representation_normal(key, n_samples, dim, mean, stddev,
                               dtype=jnp.float32):
    """Deterministic analogue of _get_rep_from_normal (host-side init)."""
    return (mean + stddev *
            jax.random.normal(key, (n_samples, dim), dtype=dtype))


# --------------------------------------------------------------------------
# Main
# --------------------------------------------------------------------------

if __name__ == "__main__":
    key = jax.random.PRNGKey(0)
    k0, k1, k2 = jax.random.split(key, 3)

    # "Parameter" initialization (dist_options = {n_samples, dim, mean, stddev}).
    n_samples, dim = 8, 32
    mean, stddev = 0.5, 2.0
    z = init_representation_normal(k0, n_samples, dim, mean, stddev)

    # forward() with no indexes -> all representations (the parameter itself).
    out_all = representation_forward(z)

    # forward(ixs) -> subset of representations (VMEM-resident gather kernel).
    ixs = jnp.array([3, 0, 5], dtype=jnp.int32)
    out_sub = representation_forward(z, ixs)

    # Same gather through the manual-DMA (z-in-HBM) fallback path.
    out_sub_dma = representation_forward(z, ixs, force_dma=True)

    # Larger gather exercising multiple grid steps and a partial last block.
    z2 = init_representation_normal(k1, 64, 32, mean, stddev)
    ixs2 = jax.random.randint(k2, (100,), 0, 64, dtype=jnp.int32)
    out_sub2 = representation_forward(z2, ixs2)

    # rescale(): fused single-pass path (small z) and forced tiled two-phase path.
    z_rs_fused = representation_rescale(z)
    z_rs_tiled = representation_rescale(z, force_tiled=True)

    # Tiled path with more than one grid step (8 MiB table, 2 row tiles).
    z3 = init_representation_normal(k1, 8192, 256, mean, stddev)
    z3_rs = representation_rescale(z3, force_tiled=True)

    jax.block_until_ready((out_all, out_sub, out_sub_dma, out_sub2,
                           z_rs_fused, z_rs_tiled, z3_rs))

    # Reference checks against plain JAX semantics (mirrors PyTorch).
    assert out_all.shape == (n_samples, dim)
    assert out_sub.shape == (ixs.shape[0], dim)
    assert jnp.allclose(out_all, z)
    assert jnp.allclose(out_sub, z[ixs])
    assert jnp.allclose(out_sub_dma, z[ixs])
    assert jnp.allclose(out_sub2, z2[ixs2])

    def _ref_rescale(x):
        m = jnp.mean(x)
        sd = jnp.std(x, ddof=1)          # torch.std_mean default: unbiased
        return (x - m) / sd

    assert jnp.allclose(z_rs_fused, _ref_rescale(z), atol=1e-5, rtol=1e-5)
    assert jnp.allclose(z_rs_tiled, _ref_rescale(z), atol=1e-5, rtol=1e-5)
    assert jnp.allclose(z3_rs, _ref_rescale(z3), atol=1e-3, rtol=1e-3)

    print("KERNEL_OK")
</pallas_src>

<mosaic_0001>
module attributes {stable_mosaic.version = 11 : i64} {
  func.func @_gather_vmem_kernel(%arg0: i32, %arg1: memref<3xi32, #tpu.memory_space<smem>>, %arg2: memref<8x32xf32, #tpu.memory_space<vmem>>, %arg3: memref<3x32xf32, #tpu.memory_space<vmem>>) attributes {dimension_semantics = [#tpu.dimension_semantics<parallel>], iteration_bounds = array<i64: 1>, scalar_prefetch = 1 : i64, scratch_operands = 0 : i64, tpu.core_type = #tpu.core_type<tc>, window_params = [{pipeline_mode = #tpu.pipeline_mode<synchronous>, transform_indices = @transform_0, window_bounds = array<i64: 8, 32>}, {transform_indices = @transform_1, window_bounds = array<i64: 3, 32>}]} {
    %c3_i32 = arith.constant 3 : i32
    %0 = arith.muli %arg0, %c3_i32 : i32
    %c0_i32 = arith.constant 0 : i32
    %1 = arith.addi %0, %c0_i32 : i32
    %c2_i32 = arith.constant 2 : i32
    %2 = arith.minsi %1, %c2_i32 : i32
    %3 = arith.index_cast %2 : i32 to index
    %4 = memref.load %arg1[%3] : memref<3xi32, #tpu.memory_space<smem>>
    %c0_i32_0 = arith.constant 0 : i32
    %c7_i32 = arith.constant 7 : i32
    %5 = arith.maxsi %c0_i32_0, %4 : i32
    %6 = arith.minsi %c7_i32, %5 : i32
    %7 = arith.index_cast %6 : i32 to index
    %c0 = arith.constant 0 : index
    %8 = vector.load %arg2[%7, %c0] : memref<8x32xf32, #tpu.memory_space<vmem>>, vector<1x32xf32>
    %c1_i32 = arith.constant 1 : i32
    %9 = arith.addi %0, %c1_i32 : i32
    %c2_i32_1 = arith.constant 2 : i32
    %10 = arith.minsi %9, %c2_i32_1 : i32
    %11 = arith.index_cast %10 : i32 to index
    %12 = memref.load %arg1[%11] : memref<3xi32, #tpu.memory_space<smem>>
    %c0_i32_2 = arith.constant 0 : i32
    %c7_i32_3 = arith.constant 7 : i32
    %13 = arith.maxsi %c0_i32_2, %12 : i32
    %14 = arith.minsi %c7_i32_3, %13 : i32
    %15 = arith.index_cast %14 : i32 to index
    %c0_4 = arith.constant 0 : index
    %16 = vector.load %arg2[%15, %c0_4] : memref<8x32xf32, #tpu.memory_space<vmem>>, vector<1x32xf32>
    %c2_i32_5 = arith.constant 2 : i32
    %17 = arith.addi %0, %c2_i32_5 : i32
    %c2_i32_6 = arith.constant 2 : i32
    %18 = arith.minsi %17, %c2_i32_6 : i32
    %19 = arith.index_cast %18 : i32 to index
    %20 = memref.load %arg1[%19] : memref<3xi32, #tpu.memory_space<smem>>
    %c0_i32_7 = arith.constant 0 : i32
    %c7_i32_8 = arith.constant 7 : i32
    %21 = arith.maxsi %c0_i32_7, %20 : i32
    %22 = arith.minsi %c7_i32_8, %21 : i32
    %23 = arith.index_cast %22 : i32 to index
    %c0_9 = arith.constant 0 : index
    %24 = vector.load %arg2[%23, %c0_9] : memref<8x32xf32, #tpu.memory_space<vmem>>, vector<1x32xf32>
    %25 = tpu.concatenate %8, %16, %24 in 0 : vector<1x32xf32>, vector<1x32xf32>, vector<1x32xf32> -> vector<3x32xf32>
    %c0_10 = arith.constant 0 : index
    %c0_11 = arith.constant 0 : index
    %26 = vector.load %arg3[%c0_10, %c0_11] : memref<3x32xf32, #tpu.memory_space<vmem>>, vector<3x32xf32>
    tpu.vector_store %arg3[%c0_10, %c0_11], %25 {strides = array<i32>} : memref<3x32xf32, #tpu.memory_space<vmem>>, vector<3x32xf32>,
    return
  }
  func.func @transform_0(%arg0: i32, %arg1: memref<3xi32, #tpu.memory_space<smem>>) -> (i32, i32) {
    %c0_i32 = arith.constant 0 : i32
    %c0_i32_0 = arith.constant 0 : i32
    %c0_i32_1 = arith.constant 0 : i32
    return %c0_i32, %c0_i32_0 : i32, i32
  }
  func.func @transform_1(%arg0: i32, %arg1: memref<3xi32, #tpu.memory_space<smem>>) -> (i32, i32) {
    %c0_i32 = arith.constant 0 : i32
    %c0_i32_0 = arith.constant 0 : i32
    return %arg0, %c0_i32 : i32, i32
  }
}

</mosaic_0001>

<llo_original>
// kernel: tpu_custom_call.1
$region0: #{tpu_custom_call.1}
  #allocation0 [shape = 'u32[]', space=smem, size = 0x4, offset = 0x4, fixed_abs, tag = 'smem constant byte address 0x4 - core index']
  #allocation1 [shape = 'u32[144,128]{1,0:T(1,128)}', space=vmem, size = 0x12000, scoped, tag = 'internal scratch']
  #allocation2 [shape = 's32[1]{0}', space=sflag, size = 0x4, scoped, tag = 'scoped memory for tpu_custom_call.1']
  #allocation3 [shape = 'u8[512]{0}', space=smem, size = 0x200, scoped, tag = 'prefetched SMEM operand 0']
  %s0 = inlined_call_operand.hbm [shape: s32[3], index: 0, kind: input, shape index: {}]
  %s1 = inlined_call_operand.hbm [shape: f32[8,32], index: 1, kind: input, shape index: {}]
  %s2 = inlined_call_operand.hbm [shape: f32[3,32], index: 2, kind: output, shape index: {}]
  %s3 = sld [smem:[#allocation0]]
  $region18: #{tpu_custom_call.1} parent=0
    _
  %s5 = ssub.s32 1, %s3
  %s6 = scalar_select 0, %s5, %s3
  %8 = dma.hbm_to_smem %s0, 16, [#allocation3], [#allocation2]
  %9 = dma.done [#allocation2], 16
  %10 = sfence
  $region1: #{tpu_custom_call.1} parent=0
    #allocation4 [shape = 'u8[4096]{0}', space=vmem, size = 0x1000, scoped, tag = 'input window, operand 1, single buffered']
    #allocation5 [shape = 's32[1]{0}', space=sflag, size = 0x4, scoped, tag = 'scoped memory for tpu_custom_call.1']
    #allocation6 [shape = 's32[1]{0}', space=sflag, size = 0x4, scoped, tag = 'scoped memory for tpu_custom_call.1']
    #allocation7 [shape = 'u8[2048]{0}', space=vmem, size = 0x800, scoped, tag = 'output window, operand 0, single buffered']
    %11 = vsyncpa [#allocation5], 0
    %12 = vsyncpa [#allocation6], 0
    // Predicated region
    $region2: #{tpu_custom_call.1} parent=1 // pred_check
      _
    $region3: #{tpu_custom_call.1} parent=1 // pred_check_branch
      %14 = sbr.rel (0) target = $region5
    $region4: #{tpu_custom_call.1} parent=1 // pred_region
      %s16 = ssub.s32 128, 128
      %17 = vsyncadd [#allocation5], %s16
      %s19 = sshll.u32 [#allocation4], 4
      %s20 = int_to_ptr.vmem [resolvable:$true] %s19
      %22 = dma.hbm_to_vmem [thread:$0]  %s1, 128, %s20, [#allocation5]
    $region5: #{tpu_custom_call.1} parent=1 // pred_fallthru
      _
    // Predicated region
    $region6: #{tpu_custom_call.1} parent=1 // pred_check
      _
    $region7: #{tpu_custom_call.1} parent=1 // pred_check_branch
      %24 = sbr.rel (0) target = $region9
    $region8: #{tpu_custom_call.1} parent=1 // pred_region
      %25 = dma.done [#allocation5], 128
    $region9: #{tpu_custom_call.1} parent=1 // pred_fallthru
      _
    %s26 = smul.u32 0, 3
    %p27 = scmp.lt.s32.totalorder %s26, 2
    %s28 = scalar_select %p27, %s26, 2
    %s29 = sld [smem:[#allocation3 + %s28]]
    %p30 = scmp.gt.s32.totalorder %s29, 0
    %s31 = scalar_select %p30, %s29, 0
    %p32 = scmp.lt.s32.totalorder %s31, 7
    %s33 = scalar_select %p32, %s31, 7
    %s34 = scalar_lea.vmem [#allocation4], %s33
    %v35 = vld [vmem:[%s34] sm:$0x1]
    %s36 = sadd.s32 %s26, 1
    %p37 = scmp.lt.s32.totalorder %s36, 2
    %s38 = scalar_select %p37, %s36, 2
    %s39 = sld [smem:[#allocation3 + %s38]]
    %p40 = scmp.gt.s32.totalorder %s39, 0
    %s41 = scalar_select %p40, %s39, 0
    %p42 = scmp.lt.s32.totalorder %s41, 7
    %s43 = scalar_select %p42, %s41, 7
    %s44 = scalar_lea.vmem [#allocation4], %s43
    %v45 = vld [vmem:[%s44] sm:$0x1]
    %s46 = sadd.s32 %s26, 2
    %p47 = scmp.lt.s32.totalorder %s46, 2
    %s48 = scalar_select %p47, %s46, 2
    %s49 = sld [smem:[#allocation3 + %s48]]
    %p50 = scmp.gt.s32.totalorder %s49, 0
    %s51 = scalar_select %p50, %s49, 0
    %p52 = scmp.lt.s32.totalorder %s51, 7
    %s53 = scalar_select %p52, %s51, 7
    %s54 = scalar_lea.vmem [#allocation4], %s53
    %v55 = vld [vmem:[%s54] sm:$0x1]
    %v57 = vrot.slane %v45, 7
    %v60 = vrot.slane %v55, 6
    %vm62 = vcmask 1040384
    %v63 = vsel %vm62, %v35, %v57
    %vm64 = vcmask 1041408
    %v65 = vsel %vm64, %v63, %v60
    %vm66 = vcmask 256000
    %67 = vst.msk [vmem:[#allocation7] sm:$0x7] %vm66, %v65
    // Predicated region
    $region10: #{tpu_custom_call.1} parent=1 // pred_check
      _
    $region11: #{tpu_custom_call.1} parent=1 // pred_check_branch
      %69 = sbr.rel (0) target = $region13
    $region12: #{tpu_custom_call.1} parent=1 // pred_region
      %s71 = ssub.s32 64, 64
      %72 = vsyncadd [#allocation6], %s71
      %s74 = sshll.u32 [#allocation7], 4
      %s75 = int_to_ptr.vmem [resolvable:$true] %s74
      %77 = dma.vmem_to_hbm [thread:$0]  %s75, 64, %s2, [#allocation6]
    $region13: #{tpu_custom_call.1} parent=1 // pred_fallthru
      _
    // Predicated region
    $region14: #{tpu_custom_call.1} parent=1 // pred_check
      _
    $region15: #{tpu_custom_call.1} parent=1 // pred_check_branch
      %79 = sbr.rel (0) target = $region17
    $region16: #{tpu_custom_call.1} parent=1 // pred_region
      %80 = dma.done [#allocation6], 64
    $region17: #{tpu_custom_call.1} parent=1 // pred_fallthru
      _
    %81 = vsyncpa [#allocation5], 1
    %82 = vsyncpa [#allocation6], 1

</llo_original>
